<compile_context>
chip_gen: v7x
topology: tpu7x:2x2x1
jax: 0.10.0
libtpu: 0.0.40
codegen_flags: <defaults>
</compile_context>

<pallas_src>
import functools

import jax
import jax.numpy as jnp
from jax import lax
from jax.experimental import pallas as pl
from jax.experimental.pallas import tpu as pltpu

BN_EPS = 1e-5
LEAKY_SLOPE = 0.01
_LANE = 128
_VMEM_BUDGET = 22 << 20  # stay well inside the 32 MiB scoped-VMEM default


def _conv_stats_kernel(w_ref, p_ref, y_ref, stat_ref):
    """Pass 1: Y_tile = W @ P_tile (lane-dense [Cout, TS]) + BN partial sums."""
    y = jnp.dot(w_ref[...], p_ref[...], preferred_element_type=jnp.float32)
    y_ref[...] = y
    # Per-channel partial statistics for this tile (reduced over the lane axis).
    stat_ref[:, 0:1] = jnp.sum(y, axis=1, keepdims=True)
    stat_ref[:, 1:2] = jnp.sum(y * y, axis=1, keepdims=True)


def _bn_act_kernel(y_ref, scale_ref, shift_ref, o_ref):
    """Pass 2: fused BatchNorm(affine) + LeakyReLU in a single elementwise pass."""
    z = y_ref[...] * scale_ref[...] + shift_ref[...]
    o_ref[...] = jnp.maximum(z, LEAKY_SLOPE * z)


def _round_up(x, m):
    return ((x + m - 1) // m) * m


def _largest_divisor_tile(size, cap):
    """Largest multiple-of-128 divisor of `size` that is <= cap (size % 128 == 0)."""
    best = _LANE
    t = _LANE
    limit = min(size, max(cap, _LANE))
    while t <= limit:
        if size % t == 0:
            best = t
        t += _LANE
    return best


def _pass1_tile(S, K, Cout, bpe):
    """Spatial tile for the conv pass.

    Budget: double-buffered (K, ts) patch block + double-buffered (Cout, ts) f32
    output block + (assumed double-buffered) weight block must fit _VMEM_BUDGET.
    Returns (tile, padded_spatial_extent).
    """
    per_lane = 2 * K * bpe + 2 * Cout * 4
    fixed = 2 * Cout * K * bpe
    cap = max(_LANE, ((max(_VMEM_BUDGET - fixed, per_lane * _LANE) // per_lane)
                      // _LANE) * _LANE)
    if S % _LANE == 0:
        return _largest_divisor_tile(S, cap), S           # no padding needed
    ts = min(cap, _round_up(S, _LANE))
    return ts, _round_up(S, ts)                           # pad spatial (lane) axis


def _pass2_tile(S_pad, Cout):
    """Spatial tile for the normalize+activation pass (blocks are f32, in + out)."""
    per_lane = 4 * Cout * 4
    cap = max(_LANE, ((_VMEM_BUDGET // per_lane) // _LANE) * _LANE)
    return _largest_divisor_tile(S_pad, cap)


@functools.partial(jax.jit, static_argnames=("pool_kernel_size", "matmul_dtype"))
def conv_down_pool(x, weight, bias, gamma, beta,
                   pool_kernel_size=(2, 2, 2), matmul_dtype=jnp.float32):
    """x: (N, Cin, D, H, W) f32; weight: (Cout, Cin, kd, kh, kw)."""
    # Per-channel conv bias is mathematically a no-op under training-mode
    # BatchNorm (the mean subtraction cancels it exactly) -> dropped.
    del bias

    N, Cin, D, H, W = x.shape
    kd, kh, kw = pool_kernel_size
    Cout = weight.shape[0]
    Do, Ho, Wo = D // kd, H // kh, W // kw
    S = Do * Ho * Wo
    K = Cin * kd * kh * kw
    bpe = jnp.dtype(matmul_dtype).itemsize

    # stride == kernel: the conv is a non-overlapping patch matmul.  Build the
    # *transposed* patch matrix (K on sublanes, spatial on lanes) so the Pallas
    # output is channel-major and lane-dense.  (One XLA relayout; see TODO above.)
    xr = x.reshape(N, Cin, Do, kd, Ho, kh, Wo, kw)
    p_t = xr.transpose(0, 1, 3, 5, 7, 2, 4, 6).reshape(N, K, S)
    w_mat = weight.reshape(Cout, K)
    if matmul_dtype != jnp.float32:
        p_t = p_t.astype(matmul_dtype)
        w_mat = w_mat.astype(matmul_dtype)

    ts, S_pad = _pass1_tile(S, K, Cout, bpe)
    if S_pad != S:
        # Zero padding keeps the BN sums exact (padded columns contribute 0);
        # the true element count is used below for mean/var.
        p_t = jnp.pad(p_t, ((0, 0), (0, 0), (0, S_pad - S)))
    n_s = S_pad // ts

    # ---- Pass 1: conv-as-matmul + per-tile BN partial sums ---------------------
    y, part = pl.pallas_call(
        _conv_stats_kernel,
        out_shape=(
            jax.ShapeDtypeStruct((N, Cout, S_pad), jnp.float32),
            jax.ShapeDtypeStruct((N, n_s, Cout, 2), jnp.float32),
        ),
        grid_spec=pltpu.PrefetchScalarGridSpec(
            num_scalar_prefetch=0,
            grid=(N, n_s),
            in_specs=[
                pl.BlockSpec((Cout, K), lambda n, s: (0, 0)),
                pl.BlockSpec((None, K, ts), lambda n, s: (n, 0, s)),
            ],
            out_specs=[
                pl.BlockSpec((None, Cout, ts), lambda n, s: (n, 0, s)),
                pl.BlockSpec((None, None, Cout, 2), lambda n, s: (n, s, 0, 0)),
            ],
        ),
        compiler_params=pltpu.CompilerParams(
            dimension_semantics=("parallel", "parallel")),
    )(w_mat, p_t)

    # ---- Tiny XLA reduction: fold BN stats + affine into scale/shift -----------
    sums = jnp.sum(part, axis=(0, 1))                        # (Cout, 2), f32
    m_total = N * S                                          # true count (pad adds 0)
    mean = sums[:, 0] / m_total
    var = jnp.maximum(sums[:, 1] / m_total - mean * mean, 0.0)   # biased, clamped
    scale = gamma * lax.rsqrt(var + BN_EPS)
    shift = beta - mean * scale
    scale = scale.reshape(Cout, 1).astype(jnp.float32)
    shift = shift.reshape(Cout, 1).astype(jnp.float32)

    # ---- Pass 2: fused normalize + LeakyReLU, in place over Y ------------------
    ts2 = _pass2_tile(S_pad, Cout)
    n_s2 = S_pad // ts2
    out = pl.pallas_call(
        _bn_act_kernel,
        out_shape=jax.ShapeDtypeStruct((N, Cout, S_pad), jnp.float32),
        grid_spec=pltpu.PrefetchScalarGridSpec(
            num_scalar_prefetch=0,
            grid=(N, n_s2),
            in_specs=[
                pl.BlockSpec((None, Cout, ts2), lambda n, s: (n, 0, s)),
                pl.BlockSpec((Cout, 1), lambda n, s: (0, 0)),
                pl.BlockSpec((Cout, 1), lambda n, s: (0, 0)),
            ],
            out_specs=pl.BlockSpec((None, Cout, ts2), lambda n, s: (n, 0, s)),
        ),
        input_output_aliases={0: 0},
        compiler_params=pltpu.CompilerParams(
            dimension_semantics=("parallel", "parallel")),
    )(y, scale, shift)

    if S_pad != S:
        out = out[:, :, :S]
    # Channel-major kernel output -> final NCDHW' is a free reshape (no transpose).
    return out.reshape(N, Cout, Do, Ho, Wo)


def _reference(x, weight, bias, gamma, beta, pool_kernel_size=(2, 2, 2)):
    """Pure-JAX reference of the PyTorch forward (training-mode BatchNorm)."""
    y = lax.conv_general_dilated(
        x, weight,
        window_strides=pool_kernel_size,
        padding="VALID",
        dimension_numbers=("NCDHW", "OIDHW", "NCDHW"),
    )
    y = y + bias.reshape(1, -1, 1, 1, 1)
    mean = jnp.mean(y, axis=(0, 2, 3, 4), keepdims=True)
    var = jnp.mean((y - mean) ** 2, axis=(0, 2, 3, 4), keepdims=True)
    y_hat = (y - mean) / jnp.sqrt(var + BN_EPS)
    y_aff = y_hat * gamma.reshape(1, -1, 1, 1, 1) + beta.reshape(1, -1, 1, 1, 1)
    return jnp.where(y_aff >= 0, y_aff, LEAKY_SLOPE * y_aff)


if __name__ == "__main__":
    key = jax.random.PRNGKey(0)

    def make_inputs(k, N, Cin, D, H, W):
        Cout = Cin * 2
        kx, kw_, kb, kg, kbe = jax.random.split(k, 5)
        x = jax.random.normal(kx, (N, Cin, D, H, W), dtype=jnp.float32)
        weight = 0.1 * jax.random.normal(kw_, (Cout, Cin, 2, 2, 2), dtype=jnp.float32)
        bias = 0.1 * jax.random.normal(kb, (Cout,), dtype=jnp.float32)
        gamma = 1.0 + 0.05 * jax.random.normal(kg, (Cout,), dtype=jnp.float32)
        beta = 0.05 * jax.random.normal(kbe, (Cout,), dtype=jnp.float32)
        return x, weight, bias, gamma, beta

    k1, k2 = jax.random.split(key)

    # Case 1: lane-aligned spatial extent (divisor path), f32 and bf16 matmul.
    x, weight, bias, gamma, beta = make_inputs(k1, N=2, Cin=4, D=16, H=16, W=16)
    ref = _reference(x, weight, bias, gamma, beta)

    out = jax.block_until_ready(conv_down_pool(x, weight, bias, gamma, beta))
    assert out.shape == (2, 8, 8, 8, 8), out.shape
    err = float(jnp.max(jnp.abs(out - ref)))
    assert jnp.allclose(out, ref, atol=1e-3, rtol=1e-3), err

    out_bf16 = jax.block_until_ready(
        conv_down_pool(x, weight, bias, gamma, beta, matmul_dtype=jnp.bfloat16))
    err_bf16 = float(jnp.max(jnp.abs(out_bf16 - ref)))
    assert jnp.allclose(out_bf16, ref, atol=7e-2, rtol=7e-2), err_bf16

    # Case 2: spatial extent not a multiple of 128 (exercises the lane-padding path).
    x2, w2, b2, g2, be2 = make_inputs(k2, N=1, Cin=3, D=10, H=10, W=10)
    ref2 = _reference(x2, w2, b2, g2, be2)
    out2 = jax.block_until_ready(conv_down_pool(x2, w2, b2, g2, be2))
    assert out2.shape == (1, 6, 5, 5, 5), out2.shape
    err2 = float(jnp.max(jnp.abs(out2 - ref2)))
    assert jnp.allclose(out2, ref2, atol=1e-3, rtol=1e-3), err2

    print("KERNEL_OK")
</pallas_src>

<mosaic_0001>
module attributes {stable_mosaic.version = 11 : i64} {
  func.func @_conv_stats_kernel(%arg0: i32, %arg1: i32, %arg2: memref<8x32xf32, #tpu.memory_space<vmem>>, %arg3: memref<1x32x512xf32, #tpu.memory_space<vmem>>, %arg4: memref<1x8x512xf32, #tpu.memory_space<vmem>>, %arg5: memref<1x1x8x2xf32, #tpu.memory_space<vmem>>) attributes {dimension_semantics = [#tpu.dimension_semantics<parallel>, #tpu.dimension_semantics<parallel>], iteration_bounds = array<i64: 2, 1>, scalar_prefetch = 0 : i64, scratch_operands = 0 : i64, tpu.core_type = #tpu.core_type<tc>, window_params = [{pipeline_mode = #tpu.pipeline_mode<synchronous>, transform_indices = @transform_0, window_bounds = array<i64: 8, 32>}, {transform_indices = @transform_1, window_bounds = array<i64: 1, 32, 512>}, {transform_indices = @transform_2, window_bounds = array<i64: 1, 8, 512>}, {transform_indices = @transform_3, window_bounds = array<i64: 1, 1, 8, 2>}]} {
    %c0 = arith.constant 0 : index
    %c0_0 = arith.constant 0 : index
    %0 = vector.load %arg2[%c0, %c0_0] : memref<8x32xf32, #tpu.memory_space<vmem>>, vector<8x32xf32>
    %c0_1 = arith.constant 0 : index
    %c0_2 = arith.constant 0 : index
    %c0_3 = arith.constant 0 : index
    %1 = vector.load %arg3[%c0_1, %c0_2, %c0_3] : memref<1x32x512xf32, #tpu.memory_space<vmem>>, vector<1x32x512xf32>
    %2 = vector.shape_cast %1 : vector<1x32x512xf32> to vector<32x512xf32>
    %cst = arith.constant dense<0.000000e+00> : vector<8x512xf32>
    %3 = tpu.matmul %0, %2, %cst {dimension_numbers = #tpu.dot_dimension_numbers<[1], [0], [0], [1], [0, 0, 1, 1], [], []>} : vector<8x32xf32>, vector<32x512xf32>, vector<8x512xf32> -> vector<8x512xf32>
    %c0_4 = arith.constant 0 : index
    %c0_5 = arith.constant 0 : index
    %c0_6 = arith.constant 0 : index
    %4 = vector.load %arg4[%c0_4, %c0_5, %c0_6] : memref<1x8x512xf32, #tpu.memory_space<vmem>>, vector<1x8x512xf32>
    %5 = vector.shape_cast %4 : vector<1x8x512xf32> to vector<8x512xf32>
    %6 = vector.shape_cast %3 : vector<8x512xf32> to vector<1x8x512xf32>
    tpu.vector_store %arg4[%c0_4, %c0_5, %c0_6], %6 {strides = array<i32>} : memref<1x8x512xf32, #tpu.memory_space<vmem>>, vector<1x8x512xf32>,
    %cst_7 = arith.constant dense<0.000000e+00> : vector<8xf32>
    %7 = vector.multi_reduction <add>, %3, %cst_7 [1] : vector<8x512xf32> to vector<8xf32>
    %8 = vector.shape_cast %7 : vector<8xf32> to vector<8x1xf32>
    %c0_8 = arith.constant 0 : index
    %c0_9 = arith.constant 0 : index
    %c0_10 = arith.constant 0 : index
    %c0_11 = arith.constant 0 : index
    %9 = vector.load %arg5[%c0_8, %c0_9, %c0_10, %c0_11] : memref<1x1x8x2xf32, #tpu.memory_space<vmem>>, vector<1x1x8x1xf32>
    %10 = vector.shape_cast %9 : vector<1x1x8x1xf32> to vector<8x1xf32>
    %11 = vector.shape_cast %8 : vector<8x1xf32> to vector<1x1x8x1xf32>
    tpu.vector_store %arg5[%c0_8, %c0_9, %c0_10, %c0_11], %11 {strides = array<i32>} : memref<1x1x8x2xf32, #tpu.memory_space<vmem>>, vector<1x1x8x1xf32>,
    %12 = arith.mulf %3, %3 : vector<8x512xf32>
    %cst_12 = arith.constant dense<0.000000e+00> : vector<8xf32>
    %13 = vector.multi_reduction <add>, %12, %cst_12 [1] : vector<8x512xf32> to vector<8xf32>
    %14 = vector.shape_cast %13 : vector<8xf32> to vector<8x1xf32>
    %c0_13 = arith.constant 0 : index
    %c0_14 = arith.constant 0 : index
    %c0_15 = arith.constant 0 : index
    %c1 = arith.constant 1 : index
    %15 = vector.load %arg5[%c0_13, %c0_14, %c0_15, %c1] : memref<1x1x8x2xf32, #tpu.memory_space<vmem>>, vector<1x1x8x1xf32>
    %16 = vector.shape_cast %15 : vector<1x1x8x1xf32> to vector<8x1xf32>
    %17 = vector.shape_cast %14 : vector<8x1xf32> to vector<1x1x8x1xf32>
    tpu.vector_store %arg5[%c0_13, %c0_14, %c0_15, %c1], %17 {strides = array<i32>} : memref<1x1x8x2xf32, #tpu.memory_space<vmem>>, vector<1x1x8x1xf32>,
    return
  }
  func.func @transform_0(%arg0: i32, %arg1: i32) -> (i32, i32) {
    %c0_i32 = arith.constant 0 : i32
    %c0_i32_0 = arith.constant 0 : i32
    %c0_i32_1 = arith.constant 0 : i32
    return %c0_i32, %c0_i32_0 : i32, i32
  }
  func.func @transform_1(%arg0: i32, %arg1: i32) -> (i32, i32, i32) {
    %c0_i32 = arith.constant 0 : i32
    %c0_i32_0 = arith.constant 0 : i32
    return %arg0, %c0_i32, %arg1 : i32, i32, i32
  }
  func.func @transform_2(%arg0: i32, %arg1: i32) -> (i32, i32, i32) {
    %c0_i32 = arith.constant 0 : i32
    %c0_i32_0 = arith.constant 0 : i32
    return %arg0, %c0_i32, %arg1 : i32, i32, i32
  }
  func.func @transform_3(%arg0: i32, %arg1: i32) -> (i32, i32, i32, i32) {
    %c0_i32 = arith.constant 0 : i32
    %c0_i32_0 = arith.constant 0 : i32
    %c0_i32_1 = arith.constant 0 : i32
    return %arg0, %arg1, %c0_i32, %c0_i32_0 : i32, i32, i32, i32
  }
}

module attributes {stable_mosaic.version = 11 : i64} {
  func.func @_bn_act_kernel(%arg0: i32, %arg1: i32, %arg2: memref<1x8x512xf32, #tpu.memory_space<vmem>>, %arg3: memref<8x1xf32, #tpu.memory_space<vmem>>, %arg4: memref<8x1xf32, #tpu.memory_space<vmem>>, %arg5: memref<1x8x512xf32, #tpu.memory_space<vmem>>) attributes {dimension_semantics = [#tpu.dimension_semantics<parallel>, #tpu.dimension_semantics<parallel>], iteration_bounds = array<i64: 2, 1>, scalar_prefetch = 0 : i64, scratch_operands = 0 : i64, tpu.core_type = #tpu.core_type<tc>, window_params = [{transform_indices = @transform_0, window_bounds = array<i64: 1, 8, 512>}, {pipeline_mode = #tpu.pipeline_mode<synchronous>, transform_indices = @transform_1, window_bounds = array<i64: 8, 1>}, {pipeline_mode = #tpu.pipeline_mode<synchronous>, transform_indices = @transform_2, window_bounds = array<i64: 8, 1>}, {transform_indices = @transform_3, window_bounds = array<i64: 1, 8, 512>}]} {
    %c0 = arith.constant 0 : index
    %c0_0 = arith.constant 0 : index
    %c0_1 = arith.constant 0 : index
    %0 = vector.load %arg2[%c0, %c0_0, %c0_1] : memref<1x8x512xf32, #tpu.memory_space<vmem>>, vector<1x8x512xf32>
    %1 = vector.shape_cast %0 : vector<1x8x512xf32> to vector<8x512xf32>
    %c0_2 = arith.constant 0 : index
    %c0_3 = arith.constant 0 : index
    %2 = vector.load %arg3[%c0_2, %c0_3] : memref<8x1xf32, #tpu.memory_space<vmem>>, vector<8x1xf32>
    %3 = vector.broadcast %2 : vector<8x1xf32> to vector<8x512xf32>
    %4 = arith.mulf %1, %3 : vector<8x512xf32>
    %c0_4 = arith.constant 0 : index
    %c0_5 = arith.constant 0 : index
    %5 = vector.load %arg4[%c0_4, %c0_5] : memref<8x1xf32, #tpu.memory_space<vmem>>, vector<8x1xf32>
    %6 = vector.broadcast %5 : vector<8x1xf32> to vector<8x512xf32>
    %7 = arith.addf %4, %6 : vector<8x512xf32>
    %cst = arith.constant 0.00999999977 : f32
    %8 = vector.broadcast %cst : f32 to vector<8x512xf32>
    %9 = arith.mulf %8, %7 : vector<8x512xf32>
    %10 = arith.maximumf %7, %9 : vector<8x512xf32>
    %c0_6 = arith.constant 0 : index
    %c0_7 = arith.constant 0 : index
    %c0_8 = arith.constant 0 : index
    %11 = vector.load %arg5[%c0_6, %c0_7, %c0_8] : memref<1x8x512xf32, #tpu.memory_space<vmem>>, vector<1x8x512xf32>
    %12 = vector.shape_cast %11 : vector<1x8x512xf32> to vector<8x512xf32>
    %13 = vector.shape_cast %10 : vector<8x512xf32> to vector<1x8x512xf32>
    tpu.vector_store %arg5[%c0_6, %c0_7, %c0_8], %13 {strides = array<i32>} : memref<1x8x512xf32, #tpu.memory_space<vmem>>, vector<1x8x512xf32>,
    return
  }
  func.func @transform_0(%arg0: i32, %arg1: i32) -> (i32, i32, i32) {
    %c0_i32 = arith.constant 0 : i32
    %c0_i32_0 = arith.constant 0 : i32
    return %arg0, %c0_i32, %arg1 : i32, i32, i32
  }
  func.func @transform_1(%arg0: i32, %arg1: i32) -> (i32, i32) {
    %c0_i32 = arith.constant 0 : i32
    %c0_i32_0 = arith.constant 0 : i32
    %c0_i32_1 = arith.constant 0 : i32
    return %c0_i32, %c0_i32_0 : i32, i32
  }
  func.func @transform_2(%arg0: i32, %arg1: i32) -> (i32, i32) {
    %c0_i32 = arith.constant 0 : i32
    %c0_i32_0 = arith.constant 0 : i32
    %c0_i32_1 = arith.constant 0 : i32
    return %c0_i32, %c0_i32_0 : i32, i32
  }
  func.func @transform_3(%arg0: i32, %arg1: i32) -> (i32, i32, i32) {
    %c0_i32 = arith.constant 0 : i32
    %c0_i32_0 = arith.constant 0 : i32
    return %arg0, %c0_i32, %arg1 : i32, i32, i32
  }
}

</mosaic_0001>

<llo_original>
// kernel: conv_down_pool.2
$region0: #{conv_down_pool.2}
  #allocation0 [shape = 'u32[]', space=smem, size = 0x4, offset = 0x4, fixed_abs, tag = 'smem constant byte address 0x4 - core index']
  #allocation1 [shape = 'u32[144,128]{1,0:T(1,128)}', space=vmem, size = 0x12000, scoped, tag = 'internal scratch']
  %s0 = inlined_call_operand.vmem [shape: f32[8,32], index: 0, kind: input, shape index: {}]
  %s1 = inlined_call_operand.vmem [shape: f32[2,32,512], index: 1, kind: input, shape index: {}]
  %s2 = inlined_call_operand.vmem [shape: f32[2,8,512], index: 2, kind: output, shape index: {0}]
  %s3 = inlined_call_operand.vmem [shape: f32[2,1,8,2], index: 3, kind: output, shape index: {1}]
  %4 = xla_tuple %s2, %s3
  %s5 = sld [smem:[#allocation0]]
  $region49: #{conv_down_pool.2} parent=0
    _
  %s7 = ssub.s32 1, %s5
  %s8 = scalar_select 0, %s7, %s5
  loop: start=0, step=1, limit=4
  $region2: #{conv_down_pool.2} parent=0 // loop_pre_header
    _
  $region3: #{conv_down_pool.2} parent=0 // loop_header
    %s10 = sphi 0, %s14
    %p11 = scmp.ge.s32.totalorder %s10, 4
    %s17 = sphi 0, %s29
    %s18 = sphi 0, %s25
    %s19 = sphi 0, %s17
    %s20 = sphi 0, %s18
    %s21 = sphi 0, %s19
    %s22 = sphi 0, %s20
    %s30 = sphi 0, %s30
    %s32 = sphi 0, %s30
    %s33 = sphi 0, %s32
    %s47 = sphi 0, %s33
    %s55 = sphi 0, %s57
    %s58 = sphi 0, %s55
    %s59 = sphi 0, %s58
    %s75 = sphi 0, %s59
    %s83 = sphi 0, %s85
    %s86 = sphi 0, %s83
    %s87 = sphi 0, %s86
    %s103 = sphi 0, %s87
    %s111 = sphi 0, %s113
    %s114 = sphi 0, %s111
    %s115 = sphi 0, %s114
    %s131 = sphi 0, %s115
  $region4: #{conv_down_pool.2} parent=0 // loop_header_branch
    %13 = sbr.rel (%p11) target = $region8
  $region5: #{conv_down_pool.2} parent=0 // loop_body
    %s15 = ssub.s32 %s10, 1
    %s16 = ssub.s32 %s10, 2
    %s23 = sadd.s32 1, %s18
    %p24 = scmp.ge.s32.totalorder %s23, 1
    %s25 = scalar_select %p24, 0, %s23
    %s26 = sadd.s32 1, %s17
    %s27 = scalar_select %p24, %s26, %s17
    %p28 = scmp.ge.s32.totalorder %s27, 2
    %s29 = scalar_select %p28, 0, %s27
    %s31 = sadd.s32 %s30, 1
    %p34 = scmp.eq.s32.totalorder %s10, 1
    %p35 = scmp.ne.s32.totalorder %s30, %s32
    %p36 = scmp.eq.s32.totalorder %s10, 0
    %p37 = por %p35, %p36
    %p38 = scmp.ne.s32.totalorder %s30, %s32
    %p39 = scmp.eq.s32.totalorder %s15, 1
    %p40 = por %p38, %p39
    %p41 = scmp.ne.s32.totalorder %s32, %s33
    %p42 = scmp.eq.s32.totalorder %s15, 0
    %p43 = por %p41, %p42
    %p44 = scmp.ne.s32.totalorder %s32, %s33
    %p45 = scmp.eq.s32.totalorder %s16, 1
    %p46 = por %p44, %p45
    %p48 = scmp.ne.s32.totalorder %s33, %s47
    %p49 = scmp.eq.s32.totalorder %s16, 0
    %p50 = por %p48, %p49
    %s51 = ssub.s32 %s17, %s29
    %s52 = ssub.s32 %s18, %s25
    %s53 = sor.u32 %s51, %s52
    %p54 = scmp.eq.s32.totalorder %s53, 0
    %s56 = sadd.s32 %s55, 1
    %s57 = scalar_select %p54, %s55, %s56
    %p60 = pneg %p54
    %p61 = scmp.eq.s32.totalorder %s10, 1
    %p62 = por %p60, %p61
    %p63 = scmp.ne.s32.totalorder %s55, %s58
    %p64 = scmp.eq.s32.totalorder %s10, 0
    %p65 = por %p63, %p64
    %p66 = scmp.ne.s32.totalorder %s55, %s58
    %p67 = scmp.eq.s32.totalorder %s15, 1
    %p68 = por %p66, %p67
    %p69 = scmp.ne.s32.totalorder %s58, %s59
    %p70 = scmp.eq.s32.totalorder %s15, 0
    %p71 = por %p69, %p70
    %p72 = scmp.ne.s32.totalorder %s58, %s59
    %p73 = scmp.eq.s32.totalorder %s16, 1
    %p74 = por %p72, %p73
    %p76 = scmp.ne.s32.totalorder %s59, %s75
    %p77 = scmp.eq.s32.totalorder %s16, 0
    %p78 = por %p76, %p77
    %s79 = ssub.s32 %s17, %s29
    %s80 = ssub.s32 %s18, %s25
    %s81 = sor.u32 %s79, %s80
    %p82 = scmp.eq.s32.totalorder %s81, 0
    %s84 = sadd.s32 %s83, 1
    %s85 = scalar_select %p82, %s83, %s84
    %p88 = pneg %p82
    %p89 = scmp.eq.s32.totalorder %s10, 1
    %p90 = por %p88, %p89
    %p91 = scmp.ne.s32.totalorder %s83, %s86
    %p92 = scmp.eq.s32.totalorder %s10, 0
    %p93 = por %p91, %p92
    %p94 = scmp.ne.s32.totalorder %s83, %s86
    %p95 = scmp.eq.s32.totalorder %s15, 1
    %p96 = por %p94, %p95
    %p97 = scmp.ne.s32.totalorder %s86, %s87
    %p98 = scmp.eq.s32.totalorder %s15, 0
    %p99 = por %p97, %p98
    %p100 = scmp.ne.s32.totalorder %s86, %s87
    %p101 = scmp.eq.s32.totalorder %s16, 1
    %p102 = por %p100, %p101
    %p104 = scmp.ne.s32.totalorder %s87, %s103
    %p105 = scmp.eq.s32.totalorder %s16, 0
    %p106 = por %p104, %p105
    %s107 = ssub.s32 %s17, %s29
    %s108 = ssub.s32 %s18, %s25
    %s109 = sor.u32 %s107, %s108
    %p110 = scmp.eq.s32.totalorder %s109, 0
    %s112 = sadd.s32 %s111, 1
    %s113 = scalar_select %p110, %s111, %s112
    %p116 = pneg %p110
    %p117 = scmp.eq.s32.totalorder %s10, 1
    %p118 = por %p116, %p117
    %p119 = scmp.ne.s32.totalorder %s111, %s114
    %p120 = scmp.eq.s32.totalorder %s10, 0
    %p121 = por %p119, %p120
    %p122 = scmp.ne.s32.totalorder %s111, %s114
    %p123 = scmp.eq.s32.totalorder %s15, 1
    %p124 = por %p122, %p123
    %p125 = scmp.ne.s32.totalorder %s114, %s115
    %p126 = scmp.eq.s32.totalorder %s15, 0
    %p127 = por %p125, %p126
    %p128 = scmp.ne.s32.totalorder %s114, %s115
    %p129 = scmp.eq.s32.totalorder %s16, 1
    %p130 = por %p128, %p129
    %p132 = scmp.ne.s32.totalorder %s115, %s131
    %p133 = scmp.eq.s32.totalorder %s16, 0
    %p134 = por %p132, %p133
    %p135 = scmp.le.s32.totalorder 1, %s10
    %p136 = scmp.lt.s32.totalorder %s10, 3
    %p137 = pnand %p135, %p136
    %p138 = pneg %p137
    // Predicated region
    $region9: #{conv_down_pool.2} parent=5 // pred_check
      _
    $region10: #{conv_down_pool.2} parent=5 // pred_check_branch
      %140 = sbr.rel (%p137) target = $region12
    $region11: #{conv_down_pool.2} parent=5 // pred_region
      %s141 = ssub.s32 %s10, 1
      // Predicated region
      $region13: #{conv_down_pool.2} parent=11 // pred_check
        %p142 = pneg %p43
      $region14: #{conv_down_pool.2} parent=11 // pred_check_branch
        %144 = sbr.rel (%p142) target = $region16
      $region15: #{conv_down_pool.2} parent=11 // pred_region
        _
      $region16: #{conv_down_pool.2} parent=11 // pred_fallthru
        _
    $region12: #{conv_down_pool.2} parent=5 // pred_fallthru
      _
    %p145 = scmp.lt.s32.totalorder %s10, 2
    // Predicated region
    $region17: #{conv_down_pool.2} parent=5 // pred_check
      %p146 = pneg %p145
    $region18: #{conv_down_pool.2} parent=5 // pred_check_branch
      %148 = sbr.rel (%p146) target = $region20
    $region19: #{conv_down_pool.2} parent=5 // pred_region
      // Predicated region
      $region21: #{conv_down_pool.2} parent=19 // pred_check
        %p149 = pneg %p65
      $region22: #{conv_down_pool.2} parent=19 // pred_check_branch
        %151 = sbr.rel (%p149) target = $region24
      $region23: #{conv_down_pool.2} parent=19 // pred_region
        %s152 = smul.u32 4, %s18
        %p153 = scmp.lt.s32.totalorder %s17, 1
        %s154 = scalar_select %p153, %s17, 1
        %p155 = scmp.lt.s32.totalorder %s152, 3
        %s156 = scalar_select %p155, %s152, 3
        %s157 = smul.addr %s154, 16
        %s158 = sadd.s32 %s156, %s157
        %s159 = smul.addr %s158, 8
        %s160 = scalar_lea.vmem %s1, %s159
        %s161 = smul.u32 4, %s18
      $region24: #{conv_down_pool.2} parent=19 // pred_fallthru
        _
    $region20: #{conv_down_pool.2} parent=5 // pred_fallthru
      _
    %p162 = scmp.le.s32.totalorder 1, %s10
    %p163 = scmp.lt.s32.totalorder %s10, 3
    %p164 = pnand %p162, %p163
    %p165 = pneg %p164
    // Predicated region
    $region25: #{conv_down_pool.2} parent=5 // pred_check
      _
    $region26: #{conv_down_pool.2} parent=5 // pred_check_branch
      %167 = sbr.rel (%p164) target = $region28
    $region27: #{conv_down_pool.2} parent=5 // pred_region
      %s168 = ssub.s32 %s10, 1
      %p169 = pneg %p43
      %p170 = pneg %p40
      %s171 = smul.u32 4, %s20
      %p172 = scmp.lt.s32.totalorder %s19, 1
      %s173 = scalar_select %p172, %s19, 1
      %p174 = scmp.lt.s32.totalorder %s171, 3
      %s175 = scalar_select %p174, %s171, 3
      %s176 = smul.addr %s173, 16
      %s177 = sadd.s32 %s175, %s176
      %s178 = smul.addr %s177, 8
      %s179 = scalar_lea.vmem %s1, %s178
      %p180 = pneg %p71
      %p181 = pneg %p68
      %p182 = pneg %p99
      %p183 = pneg %p96
      %s184 = smul.u32 4, %s20
      %p185 = scmp.lt.s32.totalorder %s19, 1
      %s186 = scalar_select %p185, %s19, 1
      %p187 = scmp.lt.s32.totalorder %s184, 3
      %s188 = scalar_select %p187, %s184, 3
      %s189 = smul.addr %s186, 4
      %s190 = sadd.s32 %s188, %s189
      %s191 = smul.addr %s190, 8
      %s192 = scalar_lea.vmem %s2, %s191
      %p193 = pneg %p127
      %p194 = pneg %p124
      %p195 = scmp.lt.s32.totalorder %s19, 1
      %s196 = scalar_select %p195, %s19, 1
      %p197 = scmp.lt.s32.totalorder %s20, 0
      %s198 = scalar_select %p197, %s20, 0
      %s199 = sadd.s32 %s198, %s196
      %s200 = smul.addr %s199, 8
      %s201 = scalar_lea.vmem %s3, %s200
      %s202 = smul.u32 4, %s20
      %p203 = scmp.lt.s32.totalorder %s19, 1
      %s204 = scalar_select %p203, %s19, 1
      %p205 = scmp.lt.s32.totalorder %s202, 3
      %s206 = scalar_select %p205, %s202, 3
      %s207 = smul.addr %s204, 16
      %s208 = sadd.s32 %s206, %s207
      %s209 = smul.addr %s208, 8
      %s210 = scalar_lea.vmem %s1, %s209
      %s211 = smul.u32 4, %s20
      %s212 = smul.u32 4, %s20
      %p213 = scmp.lt.s32.totalorder %s19, 1
      %s214 = scalar_select %p213, %s19, 1
      %p215 = scmp.lt.s32.totalorder %s212, 3
      %s216 = scalar_select %p215, %s212, 3
      %s217 = smul.addr %s214, 4
      %s218 = sadd.s32 %s216, %s217
      %s219 = smul.addr %s218, 8
      %s220 = scalar_lea.vmem %s2, %s219
      %s221 = smul.u32 4, %s20
      %p222 = scmp.lt.s32.totalorder %s19, 1
      %s223 = scalar_select %p222, %s19, 1
      %p224 = scmp.lt.s32.totalorder %s20, 0
      %s225 = scalar_select %p224, %s20, 0
      %s226 = sadd.s32 %s225, %s223
      %s227 = smul.addr %s226, 8
      %s228 = scalar_lea.vmem %s3, %s227
      %v229 = vld [vmem:[%s0] sm:$0xff]
      %v230 = vld [vmem:[%s210] sm:$0xff]
      %v231 = vld [vmem:[%s210 + $0x8] sm:$0xff]
      %v232 = vld [vmem:[%s210 + $0x10] sm:$0xff]
      %v233 = vld [vmem:[%s210 + $0x18] sm:$0xff]
      %v234 = vld [vmem:[%s210 + $0x20] sm:$0xff]
      %v235 = vld [vmem:[%s210 + $0x28] sm:$0xff]
      %v236 = vld [vmem:[%s210 + $0x30] sm:$0xff]
      %v237 = vld [vmem:[%s210 + $0x38] sm:$0xff]
      %v238 = vld [vmem:[%s210 + $0x40] sm:$0xff]
      %v239 = vld [vmem:[%s210 + $0x48] sm:$0xff]
      %v240 = vld [vmem:[%s210 + $0x50] sm:$0xff]
      %v241 = vld [vmem:[%s210 + $0x58] sm:$0xff]
      %v242 = vld [vmem:[%s210 + $0x60] sm:$0xff]
      %v243 = vld [vmem:[%s210 + $0x68] sm:$0xff]
      %v244 = vld [vmem:[%s210 + $0x70] sm:$0xff]
      %v245 = vld [vmem:[%s210 + $0x78] sm:$0xff]
      %vm246 = vcmask 261120
      %v248 = vsel %vm246, %v229, 0
      %250 = vmatprep.subr.mxu0 %v231
      %251 = vmatpush1.msra.mxu0 %v230
      %252 = vmatprep.subr.mxu0 %v235
      %253 = vmatpush1.msra.mxu0 %v234
      %254 = vmatprep.subr.mxu0 %v239
      %255 = vmatpush1.msra.mxu0 %v238
      %256 = vmatprep.subr.mxu0 %v243
      %257 = vmatpush1.msra.mxu0 %v242
      %258 = vmatprep.subr.mxu0 0.0
      %259 = vmatpush1.msra.mxu0 0.0
      %260 = vmatprep.subr.mxu0 0.0
      %261 = vmatpush1.msra.mxu0 0.0
      %262 = vmatprep.subr.mxu0 0.0
      %263 = vmatpush1.msra.mxu0 0.0
      %264 = vmatprep.subr.mxu0 0.0
      %265 = vmatpush1.msra.mxu0 0.0
      %266 = vmatprep.subr.mxu0 0.0
      %267 = vmatpush1.msra.mxu0 0.0
      %268 = vmatprep.subr.mxu0 0.0
      %269 = vmatpush1.msra.mxu0 0.0
      %270 = vmatprep.subr.mxu0 0.0
      %271 = vmatpush1.msra.mxu0 0.0
      %272 = vmatprep.subr.mxu0 0.0
      %273 = vmatpush1.msra.mxu0 0.0
      %274 = vmatprep.subr.mxu0 0.0
      %275 = vmatpush1.msra.mxu0 0.0
      %276 = vmatprep.subr.mxu0 0.0
      %277 = vmatpush1.msra.mxu0 0.0
      %278 = vmatprep.subr.mxu0 0.0
      %279 = vmatpush1.msra.mxu0 0.0
      %280 = vmatprep.subr.mxu0 0.0
      %281 = vmatpush1.msra.mxu0 0.0
      %282 = vmatprep.subr.mxu0 0.0
      %283 = vmatpush1.msra.mxu0 0.0
      %284 = vmatprep.subr.mxu0 0.0
      %285 = vmatpush1.msra.mxu0 0.0
      %286 = vmatprep.subr.mxu0 0.0
      %287 = vmatpush1.msra.mxu0 0.0
      %288 = vmatprep.subr.mxu0 0.0
      %289 = vmatpush1.msra.mxu0 0.0
      %290 = vmatprep.subr.mxu0 0.0
      %291 = vmatpush1.msra.mxu0 0.0
      %292 = vmatprep.subr.mxu0 0.0
      %293 = vmatpush1.msra.mxu0 0.0
      %294 = vmatprep.subr.mxu0 0.0
      %295 = vmatpush1.msra.mxu0 0.0
      %296 = vmatprep.subr.mxu0 0.0
      %297 = vmatpush1.msra.mxu0 0.0
      %298 = vmatprep.subr.mxu0 0.0
      %299 = vmatpush1.msra.mxu0 0.0
      %300 = vmatprep.subr.mxu0 0.0
      %301 = vmatpush1.msra.mxu0 0.0
      %302 = vmatprep.subr.mxu0 0.0
      %303 = vmatpush1.msra.mxu0 0.0
      %304 = vmatprep.subr.mxu0 0.0
      %305 = vmatpush1.msra.mxu0 0.0
      %306 = vmatprep.subr.mxu0 0.0
      %307 = vmatpush1.msra.mxu0 0.0
      %308 = vmatprep.subr.mxu0 0.0
      %309 = vmatpush1.msra.mxu0 0.0
      %310 = vmatprep.subr.mxu0 0.0
      %311 = vmatpush1.msra.mxu0 0.0
      %312 = vmatprep.subr.mxu0 0.0
      %313 = vmatpush1.msra.mxu0 0.0
      %314 = vmatprep.mubr.f32.mxu0 0.0
      %315 = vmatmul.mubr.f32.gmra.mrb[0].mxu0 %v248
      %v316 = vpop.f32.mrb[0].mxu0
      %v317 = vadd.f32 0.0, %v316
      %v318 = vpop.f32.mrb[0].mxu0
      %v319 = vadd.f32 0.0, %v318
      %320 = vdwg.mxu0
      %321 = vmatprep.subr.mxu0 %v233
      %322 = vmatpush1.msra.mxu0 %v232
      %323 = vmatprep.subr.mxu0 %v237
      %324 = vmatpush1.msra.mxu0 %v236
      %325 = vmatprep.subr.mxu0 %v241
      %326 = vmatpush1.msra.mxu0 %v240
      %327 = vmatprep.subr.mxu0 %v245
      %328 = vmatpush1.msra.mxu0 %v244
      %329 = vmatprep.subr.mxu0 0.0
      %330 = vmatpush1.msra.mxu0 0.0
      %331 = vmatprep.subr.mxu0 0.0
      %332 = vmatpush1.msra.mxu0 0.0
      %333 = vmatprep.subr.mxu0 0.0
      %334 = vmatpush1.msra.mxu0 0.0
      %335 = vmatprep.subr.mxu0 0.0
      %336 = vmatpush1.msra.mxu0 0.0
      %337 = vmatprep.subr.mxu0 0.0
      %338 = vmatpush1.msra.mxu0 0.0
      %339 = vmatprep.subr.mxu0 0.0
      %340 = vmatpush1.msra.mxu0 0.0
      %341 = vmatprep.subr.mxu0 0.0
      %342 = vmatpush1.msra.mxu0 0.0
      %343 = vmatprep.subr.mxu0 0.0
      %344 = vmatpush1.msra.mxu0 0.0
      %345 = vmatprep.subr.mxu0 0.0
      %346 = vmatpush1.msra.mxu0 0.0
      %347 = vmatprep.subr.mxu0 0.0
      %348 = vmatpush1.msra.mxu0 0.0
      %349 = vmatprep.subr.mxu0 0.0
      %350 = vmatpush1.msra.mxu0 0.0
      %351 = vmatprep.subr.mxu0 0.0
      %352 = vmatpush1.msra.mxu0 0.0
      %353 = vmatprep.subr.mxu0 0.0
      %354 = vmatpush1.msra.mxu0 0.0
      %355 = vmatprep.subr.mxu0 0.0
      %356 = vmatpush1.msra.mxu0 0.0
      %357 = vmatprep.subr.mxu0 0.0
      %358 = vmatpush1.msra.mxu0 0.0
      %359 = vmatprep.subr.mxu0 0.0
      %360 = vmatpush1.msra.mxu0 0.0
      %361 = vmatprep.subr.mxu0 0.0
      %362 = vmatpush1.msra.mxu0 0.0
      %363 = vmatprep.subr.mxu0 0.0
      %364 = vmatpush1.msra.mxu0 0.0
      %365 = vmatprep.subr.mxu0 0.0
      %366 = vmatpush1.msra.mxu0 0.0
      %367 = vmatprep.subr.mxu0 0.0
      %368 = vmatpush1.msra.mxu0 0.0
      %369 = vmatprep.subr.mxu0 0.0
      %370 = vmatpush1.msra.mxu0 0.0
      %371 = vmatprep.subr.mxu0 0.0
      %372 = vmatpush1.msra.mxu0 0.0
      %373 = vmatprep.subr.mxu0 0.0
      %374 = vmatpush1.msra.mxu0 0.0
      %375 = vmatprep.subr.mxu0 0.0
      %376 = vmatpush1.msra.mxu0 0.0
      %377 = vmatprep.subr.mxu0 0.0
      %378 = vmatpush1.msra.mxu0 0.0
      %379 = vmatprep.subr.mxu0 0.0
      %380 = vmatpush1.msra.mxu0 0.0
      %381 = vmatprep.subr.mxu0 0.0
      %382 = vmatpush1.msra.mxu0 0.0
      %383 = vmatprep.subr.mxu0 0.0
      %384 = vmatpush1.msra.mxu0 0.0
      %385 = vmatprep.mubr.f32.mxu0 0.0
      %386 = vmatmul.mubr.f32.gmra.mrb[0].mxu0 %v248
      %v387 = vpop.f32.mrb[0].mxu0
      %v388 = vadd.f32 0.0, %v387
      %v389 = vpop.f32.mrb[0].mxu0
      %v390 = vadd.f32 0.0, %v389
      %391 = vdwg.mxu0
      %392 = vst [vmem:[%s220] sm:$0xff] %v317
      %393 = vst [vmem:[%s220 + $0x8] sm:$0xff] %v319
      %394 = vst [vmem:[%s220 + $0x10] sm:$0xff] %v388
      %395 = vst [vmem:[%s220 + $0x18] sm:$0xff] %v390
      %v396 = vadd.f32 %v317, %v319
      %v397 = vadd.f32 %v396, %v388
      %v398 = vadd.f32 %v397, %v390
      %399 = vadd.xlane.f32.xlu0 %v398
      %v400 = vpop.xlane.xlu0 %399
      %vm401 = vcmask 7168
      %402 = vst.msk [vmem:[%s228] sm:$0xff] %vm401, %v400
      %v403 = vmul.f32 %v317, %v317
      %v404 = vmul.f32 %v319, %v319
      %v405 = vmul.f32 %v388, %v388
      %v406 = vmul.f32 %v390, %v390
      %v407 = vadd.f32 %v403, %v404
      %v408 = vadd.f32 %v407, %v405
      %v409 = vadd.f32 %v408, %v406
      %410 = vadd.xlane.f32.xlu0 %v409
      %v411 = vpop.xlane.xlu0 %410
      %vm412 = vcmask 15368
      %413 = vst.msk [vmem:[%s228] sm:$0xff] %vm412, %v411
      %s414 = smul.u32 4, %s20
      %p415 = scmp.lt.s32.totalorder %s19, 1
      %s416 = scalar_select %p415, %s19, 1
      %p417 = scmp.lt.s32.totalorder %s414, 3
      %s418 = scalar_select %p417, %s414, 3
      %s419 = smul.addr %s416, 4
      %s420 = sadd.s32 %s418, %s419
      %s421 = smul.addr %s420, 8
      %s422 = scalar_lea.vmem %s2, %s421
      %p423 = scmp.lt.s32.totalorder %s19, 1
      %s424 = scalar_select %p423, %s19, 1
      %p425 = scmp.lt.s32.totalorder %s20, 0
      %s426 = scalar_select %p425, %s20, 0
      %s427 = sadd.s32 %s426, %s424
      %s428 = smul.addr %s427, 8
      %s429 = scalar_lea.vmem %s3, %s428
      // Predicated region
      $region29: #{conv_down_pool.2} parent=27 // pred_check
        %p430 = pneg %p96
      $region30: #{conv_down_pool.2} parent=27 // pred_check_branch
        %432 = sbr.rel (%p430) target = $region32
      $region31: #{conv_down_pool.2} parent=27 // pred_region
        %s433 = smul.u32 4, %s20
      $region32: #{conv_down_pool.2} parent=27 // pred_fallthru
        _
      // Predicated region
      $region33: #{conv_down_pool.2} parent=27 // pred_check
        %p434 = pneg %p124
      $region34: #{conv_down_pool.2} parent=27 // pred_check_branch
        %436 = sbr.rel (%p434) target = $region36
      $region35: #{conv_down_pool.2} parent=27 // pred_region
        _
      $region36: #{conv_down_pool.2} parent=27 // pred_fallthru
        _
    $region28: #{conv_down_pool.2} parent=5 // pred_fallthru
      _
    %p437 = scmp.le.s32.totalorder 2, %s10
    // Predicated region
    $region37: #{conv_down_pool.2} parent=5 // pred_check
      %p438 = pneg %p437
    $region38: #{conv_down_pool.2} parent=5 // pred_check_branch
      %440 = sbr.rel (%p438) target = $region40
    $region39: #{conv_down_pool.2} parent=5 // pred_region
      %s441 = ssub.s32 %s10, 2
      // Predicated region
      $region41: #{conv_down_pool.2} parent=39 // pred_check
        %p442 = pneg %p102
      $region42: #{conv_down_pool.2} parent=39 // pred_check_branch
        %444 = sbr.rel (%p442) target = $region44
      $region43: #{conv_down_pool.2} parent=39 // pred_region
        %s445 = smul.u32 4, %s22
        %p446 = scmp.lt.s32.totalorder %s21, 1
        %s447 = scalar_select %p446, %s21, 1
        %p448 = scmp.lt.s32.totalorder %s445, 3
        %s449 = scalar_select %p448, %s445, 3
        %s450 = smul.addr %s447, 4
        %s451 = sadd.s32 %s449, %s450
        %s452 = smul.addr %s451, 8
        %s453 = scalar_lea.vmem %s2, %s452
      $region44: #{conv_down_pool.2} parent=39 // pred_fallthru
        _
      // Predicated region
      $region45: #{conv_down_pool.2} parent=39 // pred_check
        %p454 = pneg %p130
      $region46: #{conv_down_pool.2} parent=39 // pred_check_branch
        %456 = sbr.rel (%p454) target = $region48
      $region47: #{conv_down_pool.2} parent=39 // pred_region
        %p457 = scmp.lt.s32.totalorder %s21, 1
        %s458 = scalar_select %p457, %s21, 1
        %p459 = scmp.lt.s32.totalorder %s22, 0
        %s460 = scalar_select %p459, %s22, 0
        %s461 = sadd.s32 %s460, %s458
        %s462 = smul.addr %s461, 8
        %s463 = scalar_lea.vmem %s3, %s462
      $region48: #{conv_down_pool.2} parent=39 // pred_fallthru
        _
    $region40: #{conv_down_pool.2} parent=5 // pred_fallthru
      _
  $region6: #{conv_down_pool.2} parent=0 // loop_footer
    %s14 = sadd.s32 1, %s10
  $region7: #{conv_down_pool.2} parent=0 // loop_footer_branch
    %9 = sbr.rel target = $region3
  $region8: #{conv_down_pool.2} parent=0 // loop_exit
    _

// kernel: conv_down_pool.3
$region0: #{conv_down_pool.3}
  #allocation0 [shape = 'u32[]', space=smem, size = 0x4, offset = 0x4, fixed_abs, tag = 'smem constant byte address 0x4 - core index']
  #allocation1 [shape = 'u32[144,128]{1,0:T(1,128)}', space=vmem, size = 0x12000, scoped, tag = 'internal scratch']
  %s0 = inlined_call_operand.vmem [shape: f32[2,8,512], index: 0, kind: input, shape index: {}, may-alias: {0,3}]
  %s1 = inlined_call_operand.vmem [shape: f32[8,1], index: 1, kind: input, shape index: {}]
  %s2 = inlined_call_operand.vmem [shape: f32[8,1], index: 2, kind: input, shape index: {}]
  %s3 = inlined_call_operand.vmem [shape: f32[2,8,512], index: 3, kind: output, shape index: {}, may-alias: {0,3}]
  %s4 = sld [smem:[#allocation0]]
  $region45: #{conv_down_pool.3} parent=0
    _
  %s6 = ssub.s32 1, %s4
  %s7 = scalar_select 0, %s6, %s4
  loop: start=0, step=1, limit=4
  $region2: #{conv_down_pool.3} parent=0 // loop_pre_header
    _
  $region3: #{conv_down_pool.3} parent=0 // loop_header
    %s9 = sphi 0, %s13
    %p10 = scmp.ge.s32.totalorder %s9, 4
    %s16 = sphi 0, %s28
    %s17 = sphi 0, %s24
    %s18 = sphi 0, %s16
    %s19 = sphi 0, %s17
    %s20 = sphi 0, %s18
    %s21 = sphi 0, %s19
    %s33 = sphi 0, %s35
    %s36 = sphi 0, %s33
    %s37 = sphi 0, %s36
    %s53 = sphi 0, %s37
    %s57 = sphi 0, %s57
    %s59 = sphi 0, %s57
    %s60 = sphi 0, %s59
    %s74 = sphi 0, %s60
    %s78 = sphi 0, %s78
    %s80 = sphi 0, %s78
    %s81 = sphi 0, %s80
    %s95 = sphi 0, %s81
    %s103 = sphi 0, %s105
    %s106 = sphi 0, %s103
    %s107 = sphi 0, %s106
    %s123 = sphi 0, %s107
  $region4: #{conv_down_pool.3} parent=0 // loop_header_branch
    %12 = sbr.rel (%p10) target = $region8
  $region5: #{conv_down_pool.3} parent=0 // loop_body
    %s14 = ssub.s32 %s9, 1
    %s15 = ssub.s32 %s9, 2
    %s22 = sadd.s32 1, %s17
    %p23 = scmp.ge.s32.totalorder %s22, 1
    %s24 = scalar_select %p23, 0, %s22
    %s25 = sadd.s32 1, %s16
    %s26 = scalar_select %p23, %s25, %s16
    %p27 = scmp.ge.s32.totalorder %s26, 2
    %s28 = scalar_select %p27, 0, %s26
    %s29 = ssub.s32 %s16, %s28
    %s30 = ssub.s32 %s17, %s24
    %s31 = sor.u32 %s29, %s30
    %p32 = scmp.eq.s32.totalorder %s31, 0
    %s34 = sadd.s32 %s33, 1
    %s35 = scalar_select %p32, %s33, %s34
    %p38 = pneg %p32
    %p39 = scmp.eq.s32.totalorder %s9, 1
    %p40 = por %p38, %p39
    %p41 = scmp.ne.s32.totalorder %s33, %s36
    %p42 = scmp.eq.s32.totalorder %s9, 0
    %p43 = por %p41, %p42
    %p44 = scmp.ne.s32.totalorder %s33, %s36
    %p45 = scmp.eq.s32.totalorder %s14, 1
    %p46 = por %p44, %p45
    %p47 = scmp.ne.s32.totalorder %s36, %s37
    %p48 = scmp.eq.s32.totalorder %s14, 0
    %p49 = por %p47, %p48
    %p50 = scmp.ne.s32.totalorder %s36, %s37
    %p51 = scmp.eq.s32.totalorder %s15, 1
    %p52 = por %p50, %p51
    %p54 = scmp.ne.s32.totalorder %s37, %s53
    %p55 = scmp.eq.s32.totalorder %s15, 0
    %p56 = por %p54, %p55
    %s58 = sadd.s32 %s57, 1
    %p61 = scmp.eq.s32.totalorder %s9, 1
    %p62 = scmp.ne.s32.totalorder %s57, %s59
    %p63 = scmp.eq.s32.totalorder %s9, 0
    %p64 = por %p62, %p63
    %p65 = scmp.ne.s32.totalorder %s57, %s59
    %p66 = scmp.eq.s32.totalorder %s14, 1
    %p67 = por %p65, %p66
    %p68 = scmp.ne.s32.totalorder %s59, %s60
    %p69 = scmp.eq.s32.totalorder %s14, 0
    %p70 = por %p68, %p69
    %p71 = scmp.ne.s32.totalorder %s59, %s60
    %p72 = scmp.eq.s32.totalorder %s15, 1
    %p73 = por %p71, %p72
    %p75 = scmp.ne.s32.totalorder %s60, %s74
    %p76 = scmp.eq.s32.totalorder %s15, 0
    %p77 = por %p75, %p76
    %s79 = sadd.s32 %s78, 1
    %p82 = scmp.eq.s32.totalorder %s9, 1
    %p83 = scmp.ne.s32.totalorder %s78, %s80
    %p84 = scmp.eq.s32.totalorder %s9, 0
    %p85 = por %p83, %p84
    %p86 = scmp.ne.s32.totalorder %s78, %s80
    %p87 = scmp.eq.s32.totalorder %s14, 1
    %p88 = por %p86, %p87
    %p89 = scmp.ne.s32.totalorder %s80, %s81
    %p90 = scmp.eq.s32.totalorder %s14, 0
    %p91 = por %p89, %p90
    %p92 = scmp.ne.s32.totalorder %s80, %s81
    %p93 = scmp.eq.s32.totalorder %s15, 1
    %p94 = por %p92, %p93
    %p96 = scmp.ne.s32.totalorder %s81, %s95
    %p97 = scmp.eq.s32.totalorder %s15, 0
    %p98 = por %p96, %p97
    %s99 = ssub.s32 %s16, %s28
    %s100 = ssub.s32 %s17, %s24
    %s101 = sor.u32 %s99, %s100
    %p102 = scmp.eq.s32.totalorder %s101, 0
    %s104 = sadd.s32 %s103, 1
    %s105 = scalar_select %p102, %s103, %s104
    %p108 = pneg %p102
    %p109 = scmp.eq.s32.totalorder %s9, 1
    %p110 = por %p108, %p109
    %p111 = scmp.ne.s32.totalorder %s103, %s106
    %p112 = scmp.eq.s32.totalorder %s9, 0
    %p113 = por %p111, %p112
    %p114 = scmp.ne.s32.totalorder %s103, %s106
    %p115 = scmp.eq.s32.totalorder %s14, 1
    %p116 = por %p114, %p115
    %p117 = scmp.ne.s32.totalorder %s106, %s107
    %p118 = scmp.eq.s32.totalorder %s14, 0
    %p119 = por %p117, %p118
    %p120 = scmp.ne.s32.totalorder %s106, %s107
    %p121 = scmp.eq.s32.totalorder %s15, 1
    %p122 = por %p120, %p121
    %p124 = scmp.ne.s32.totalorder %s107, %s123
    %p125 = scmp.eq.s32.totalorder %s15, 0
    %p126 = por %p124, %p125
    %p127 = scmp.le.s32.totalorder 1, %s9
    %p128 = scmp.lt.s32.totalorder %s9, 3
    %p129 = pnand %p127, %p128
    %p130 = pneg %p129
    // Predicated region
    $region9: #{conv_down_pool.3} parent=5 // pred_check
      _
    $region10: #{conv_down_pool.3} parent=5 // pred_check_branch
      %132 = sbr.rel (%p129) target = $region12
    $region11: #{conv_down_pool.3} parent=5 // pred_region
      %s133 = ssub.s32 %s9, 1
      // Predicated region
      $region13: #{conv_down_pool.3} parent=11 // pred_check
        %p134 = pneg %p70
      $region14: #{conv_down_pool.3} parent=11 // pred_check_branch
        %136 = sbr.rel (%p134) target = $region16
      $region15: #{conv_down_pool.3} parent=11 // pred_region
        _
      $region16: #{conv_down_pool.3} parent=11 // pred_fallthru
        _
      // Predicated region
      $region17: #{conv_down_pool.3} parent=11 // pred_check
        %p137 = pneg %p91
      $region18: #{conv_down_pool.3} parent=11 // pred_check_branch
        %139 = sbr.rel (%p137) target = $region20
      $region19: #{conv_down_pool.3} parent=11 // pred_region
        _
      $region20: #{conv_down_pool.3} parent=11 // pred_fallthru
        _
    $region12: #{conv_down_pool.3} parent=5 // pred_fallthru
      _
    %p140 = scmp.lt.s32.totalorder %s9, 2
    // Predicated region
    $region21: #{conv_down_pool.3} parent=5 // pred_check
      %p141 = pneg %p140
    $region22: #{conv_down_pool.3} parent=5 // pred_check_branch
      %143 = sbr.rel (%p141) target = $region24
    $region23: #{conv_down_pool.3} parent=5 // pred_region
      // Predicated region
      $region25: #{conv_down_pool.3} parent=23 // pred_check
        %p144 = pneg %p43
      $region26: #{conv_down_pool.3} parent=23 // pred_check_branch
        %146 = sbr.rel (%p144) target = $region28
      $region27: #{conv_down_pool.3} parent=23 // pred_region
        %s147 = smul.u32 4, %s17
        %p148 = scmp.lt.s32.totalorder %s16, 1
        %s149 = scalar_select %p148, %s16, 1
        %p150 = scmp.lt.s32.totalorder %s147, 3
        %s151 = scalar_select %p150, %s147, 3
        %s152 = smul.addr %s149, 4
        %s153 = sadd.s32 %s151, %s152
        %s154 = smul.addr %s153, 8
        %s155 = scalar_lea.vmem %s0, %s154
        %s156 = smul.u32 4, %s17
      $region28: #{conv_down_pool.3} parent=23 // pred_fallthru
        _
    $region24: #{conv_down_pool.3} parent=5 // pred_fallthru
      _
    %p157 = scmp.le.s32.totalorder 1, %s9
    %p158 = scmp.lt.s32.totalorder %s9, 3
    %p159 = pnand %p157, %p158
    %p160 = pneg %p159
    // Predicated region
    $region29: #{conv_down_pool.3} parent=5 // pred_check
      _
    $region30: #{conv_down_pool.3} parent=5 // pred_check_branch
      %162 = sbr.rel (%p159) target = $region32
    $region31: #{conv_down_pool.3} parent=5 // pred_region
      %s163 = ssub.s32 %s9, 1
      %s164 = smul.u32 4, %s19
      %p165 = scmp.lt.s32.totalorder %s18, 1
      %s166 = scalar_select %p165, %s18, 1
      %p167 = scmp.lt.s32.totalorder %s164, 3
      %s168 = scalar_select %p167, %s164, 3
      %s169 = smul.addr %s166, 4
      %s170 = sadd.s32 %s168, %s169
      %s171 = smul.addr %s170, 8
      %s172 = scalar_lea.vmem %s0, %s171
      %p173 = pneg %p49
      %p174 = pneg %p46
      %p175 = pneg %p70
      %p176 = pneg %p67
      %p177 = pneg %p91
      %p178 = pneg %p88
      %p179 = pneg %p119
      %p180 = pneg %p116
      %s181 = smul.u32 4, %s19
      %p182 = scmp.lt.s32.totalorder %s18, 1
      %s183 = scalar_select %p182, %s18, 1
      %p184 = scmp.lt.s32.totalorder %s181, 3
      %s185 = scalar_select %p184, %s181, 3
      %s186 = smul.addr %s183, 4
      %s187 = sadd.s32 %s185, %s186
      %s188 = smul.addr %s187, 8
      %s189 = scalar_lea.vmem %s3, %s188
      %s190 = smul.u32 4, %s19
      %p191 = scmp.lt.s32.totalorder %s18, 1
      %s192 = scalar_select %p191, %s18, 1
      %p193 = scmp.lt.s32.totalorder %s190, 3
      %s194 = scalar_select %p193, %s190, 3
      %s195 = smul.addr %s192, 4
      %s196 = sadd.s32 %s194, %s195
      %s197 = smul.addr %s196, 8
      %s198 = scalar_lea.vmem %s0, %s197
      %s199 = smul.u32 4, %s19
      %s200 = smul.u32 4, %s19
      %p201 = scmp.lt.s32.totalorder %s18, 1
      %s202 = scalar_select %p201, %s18, 1
      %p203 = scmp.lt.s32.totalorder %s200, 3
      %s204 = scalar_select %p203, %s200, 3
      %s205 = smul.addr %s202, 4
      %s206 = sadd.s32 %s204, %s205
      %s207 = smul.addr %s206, 8
      %s208 = scalar_lea.vmem %s3, %s207
      %s209 = smul.u32 4, %s19
      %v210 = vld [vmem:[%s198] sm:$0xff]
      %v211 = vld [vmem:[%s198 + $0x8] sm:$0xff]
      %v212 = vld [vmem:[%s198 + $0x10] sm:$0xff]
      %v213 = vld [vmem:[%s198 + $0x18] sm:$0xff]
      %v214 = vld [vmem:[%s1] sm:$0xff]
      %216 = vset.pattern.permute.xlu0 0
      %217 = vperm.xlu0 %216, %v214
      %v218 = vpop.permute.xlu0 %217
      %v220 = vmul.f32 %v210, %v218
      %v221 = vmul.f32 %v211, %v218
      %v222 = vmul.f32 %v212, %v218
      %v223 = vmul.f32 %v213, %v218
      %v224 = vld [vmem:[%s2] sm:$0xff]
      %226 = vset.pattern.permute.xlu0 0
      %227 = vperm.xlu0 %226, %v224
      %v228 = vpop.permute.xlu0 %227
      %v230 = vadd.f32 %v220, %v228
      %v231 = vadd.f32 %v221, %v228
      %v232 = vadd.f32 %v222, %v228
      %v233 = vadd.f32 %v223, %v228
      %v234 = vmul.f32 %v230, 0.01
      %v235 = vmul.f32 %v231, 0.01
      %v236 = vmul.f32 %v232, 0.01
      %v237 = vmul.f32 %v233, 0.01
      %v238 = vmax.f32 %v230, %v234
      %v239 = vmax.f32 %v231, %v235
      %v240 = vmax.f32 %v232, %v236
      %v241 = vmax.f32 %v233, %v237
      %242 = vst [vmem:[%s208] sm:$0xff] %v238
      %243 = vst [vmem:[%s208 + $0x8] sm:$0xff] %v239
      %244 = vst [vmem:[%s208 + $0x10] sm:$0xff] %v240
      %245 = vst [vmem:[%s208 + $0x18] sm:$0xff] %v241
      %s246 = smul.u32 4, %s19
      %p247 = scmp.lt.s32.totalorder %s18, 1
      %s248 = scalar_select %p247, %s18, 1
      %p249 = scmp.lt.s32.totalorder %s246, 3
      %s250 = scalar_select %p249, %s246, 3
      %s251 = smul.addr %s248, 4
      %s252 = sadd.s32 %s250, %s251
      %s253 = smul.addr %s252, 8
      %s254 = scalar_lea.vmem %s3, %s253
      // Predicated region
      $region33: #{conv_down_pool.3} parent=31 // pred_check
        %p255 = pneg %p116
      $region34: #{conv_down_pool.3} parent=31 // pred_check_branch
        %257 = sbr.rel (%p255) target = $region36
      $region35: #{conv_down_pool.3} parent=31 // pred_region
        %s258 = smul.u32 4, %s19
      $region36: #{conv_down_pool.3} parent=31 // pred_fallthru
        _
    $region32: #{conv_down_pool.3} parent=5 // pred_fallthru
      _
    %p259 = scmp.le.s32.totalorder 2, %s9
    // Predicated region
    $region37: #{conv_down_pool.3} parent=5 // pred_check
      %p260 = pneg %p259
    $region38: #{conv_down_pool.3} parent=5 // pred_check_branch
      %262 = sbr.rel (%p260) target = $region40
    $region39: #{conv_down_pool.3} parent=5 // pred_region
      %s263 = ssub.s32 %s9, 2
      // Predicated region
      $region41: #{conv_down_pool.3} parent=39 // pred_check
        %p264 = pneg %p122
      $region42: #{conv_down_pool.3} parent=39 // pred_check_branch
        %266 = sbr.rel (%p264) target = $region44
      $region43: #{conv_down_pool.3} parent=39 // pred_region
        %s267 = smul.u32 4, %s21
        %p268 = scmp.lt.s32.totalorder %s20, 1
        %s269 = scalar_select %p268, %s20, 1
        %p270 = scmp.lt.s32.totalorder %s267, 3
        %s271 = scalar_select %p270, %s267, 3
        %s272 = smul.addr %s269, 4
        %s273 = sadd.s32 %s271, %s272
        %s274 = smul.addr %s273, 8
        %s275 = scalar_lea.vmem %s3, %s274
      $region44: #{conv_down_pool.3} parent=39 // pred_fallthru
        _
    $region40: #{conv_down_pool.3} parent=5 // pred_fallthru
      _
  $region6: #{conv_down_pool.3} parent=0 // loop_footer
    %s13 = sadd.s32 1, %s9
  $region7: #{conv_down_pool.3} parent=0 // loop_footer_branch
    %8 = sbr.rel target = $region3
  $region8: #{conv_down_pool.3} parent=0 // loop_exit
    _

</llo_original>
